<compile_context>
chip_gen: v6e
topology: v6e:2x2x1
jax: 0.10.0
libtpu: 0.0.40
codegen_flags: <defaults>
</compile_context>

<pallas_src>
import jax
import jax.numpy as jnp
from jax import lax
from jax.experimental import pallas as pl
from jax.experimental.pallas import tpu as pltpu

GAMMA = 1.5   # fixed by the z*sqrt(z) trick
ALPHA = 0.25

_PAD_PRED = -100.0   # together with true=0 this yields exactly zero loss
_PAD_TRUE = 0.0
_LANES = 128
_CHUNK_ROWS = 256    # rows per inner sub-chunk (keeps temporaries in vregs)


def focal_loss(pred, true, *, target_tile_rows=4096, num_splits=2):
    """Mean focal loss (gamma=1.5, alpha=0.25) over arbitrarily-shaped inputs."""
    assert pred.shape == true.shape
    lanes = _LANES
    total = int(pred.size)
    assert total > 0

    # ---- lane-dense [rows, 128] view, minimal (or zero) padding -------------
    rows = max(-(-total // lanes), 8)      # ceil; >= 8 so an (8,128) block exists
    pad = rows * lanes - total             # 0 for lane-aligned inputs

    pred_flat = pred.reshape(-1)
    true_flat = true.reshape(-1)
    if pad:
        # Only lane-ragged (total % 128 != 0) or tiny inputs pay this single,
        # minimal pad copy; pad values contribute exactly zero focal loss.
        pred_flat = jnp.pad(pred_flat, (0, pad), constant_values=_PAD_PRED)
        true_flat = jnp.pad(true_flat, (0, pad), constant_values=_PAD_TRUE)
    # TODO(synk): if labels are hard 0/1, emit `true` as int8/bf16 at the
    # producer (a standalone cast pass here is a wash) to cut HBM bytes.
    pred2d = pred_flat.reshape(rows, lanes)
    true2d = true_flat.reshape(rows, lanes)

    # ---- tiling --------------------------------------------------------------
    chunk = _CHUNK_ROWS
    tile_rows = min(target_tile_rows, max(8, (rows // 8) * 8))  # <= rows, mult of 8
    if tile_rows >= chunk:
        tile_rows = (tile_rows // chunk) * chunk                # multiple of chunk
    else:
        chunk = tile_rows                                       # one chunk per block

    blocks = -(-rows // tile_rows)                              # real data blocks
    splits = num_splits if blocks >= num_splits else 1
    blocks_per_split = -(-blocks // splits)
    grid_blocks = splits * blocks_per_split                     # may exceed blocks
    needs_mask = (rows % tile_rows != 0) or (grid_blocks != blocks)
    n_chunks = tile_rows // chunk
    last_block = blocks - 1

    def in_map(c, i):
        b = c * blocks_per_split + i
        if grid_blocks != blocks:           # trace-time constant branch
            b = jnp.minimum(b, last_block)  # clamp redundant grid points
        return (b, 0)

    def block_loss_sum(pred_ref, true_ref, valid_rows):
        """Focal-loss sum over one (tile_rows,128) block, folded to (8,128).

        valid_rows=None -> fully valid block (no masking compiled in);
        otherwise rows with index >= valid_rows are zeroed.
        """
        if valid_rows is not None:
            rid = lax.broadcasted_iota(jnp.int32, (chunk, lanes), 0)

        def body(c, acc):
            r0 = c * chunk
            rs = pl.multiple_of(r0, chunk)
            x = pred_ref[pl.ds(rs, chunk), :].astype(jnp.float32)
            t = true_ref[pl.ds(rs, chunk), :].astype(jnp.float32)

            # Stable BCE-with-logits; exp(-|x|) is shared with the sigmoid.
            e = jnp.exp(-jnp.abs(x))
            bce = jnp.maximum(x, 0.0) - x * t + jnp.log1p(e)
            inv = pl.reciprocal(1.0 + e, approx=True)      # EUP rcp (~2^-14 rel err)
            p = jnp.where(x >= 0.0, inv, e * inv)

            # z = 1 - p_t = p + t - 2*p*t ; clamp >= 0 so sqrt never sees the
            # approximate reciprocal overshooting 1 (would give NaN).
            z = jnp.maximum(p + t - 2.0 * p * t, 0.0)
            alpha_f = (1.0 - ALPHA) + t * (2.0 * ALPHA - 1.0)
            loss = bce * (alpha_f * (z * jnp.sqrt(z)))      # z**1.5 without pow

            if valid_rows is not None:
                loss = jnp.where(rid < (valid_rows - r0), loss, 0.0)

            # Fold (chunk,128) -> (8,128) with plain vreg adds (layout-free
            # reshape: splits exactly on the (8,128) vreg tiling).
            return acc + loss.reshape(-1, 8, lanes).sum(axis=0)

        return lax.fori_loop(0, n_chunks, body,
                             jnp.zeros((8, lanes), jnp.float32), unroll=True)

    def kernel(pred_ref, true_ref, out_ref):
        i = pl.program_id(1)

        @pl.when(i == 0)
        def _init():
            out_ref[...] = jnp.zeros_like(out_ref)

        if not needs_mask:
            out_ref[...] += block_loss_sum(pred_ref, true_ref, None)
        else:
            b = pl.program_id(0) * blocks_per_split + i     # unclamped global block
            valid_rows = rows - b * tile_rows               # may be <=0 (redundant)
            is_full = valid_rows >= tile_rows

            @pl.when(is_full)
            def _full():
                out_ref[...] += block_loss_sum(pred_ref, true_ref, None)

            @pl.when(jnp.logical_not(is_full))
            def _partial():
                out_ref[...] += block_loss_sum(pred_ref, true_ref, valid_rows)

    partials = pl.pallas_call(
        kernel,
        out_shape=jax.ShapeDtypeStruct((splits * 8, lanes), jnp.float32),
        grid_spec=pltpu.PrefetchScalarGridSpec(
            num_scalar_prefetch=0,
            grid=(splits, blocks_per_split),
            in_specs=[
                pl.BlockSpec((tile_rows, lanes), in_map),
                pl.BlockSpec((tile_rows, lanes), in_map),
            ],
            out_specs=pl.BlockSpec((8, lanes), lambda c, i: (c, 0)),
        ),
        compiler_params=pltpu.CompilerParams(
            dimension_semantics=("parallel", "arbitrary"),
            vmem_limit_bytes=32 * 1024 * 1024,
        ),
    )(pred2d, true2d)

    # Tiny final cross-lane reduce + mean-divide done once, outside the kernel.
    return jnp.sum(partials) / jnp.float32(total)


def _reference(pred, true):
    x = pred.astype(jnp.float32)
    t = true.astype(jnp.float32)
    bce = jnp.maximum(x, 0.0) - x * t + jnp.log1p(jnp.exp(-jnp.abs(x)))
    p = jax.nn.sigmoid(x)
    p_t = t * p + (1.0 - t) * (1.0 - p)
    loss = bce * (t * ALPHA + (1.0 - t) * (1.0 - ALPHA)) * jnp.power(1.0 - p_t, GAMMA)
    return jnp.mean(loss)


def _check(pred, true):
    out = jax.block_until_ready(focal_loss(pred, true))
    ref = jax.block_until_ready(_reference(pred, true))
    assert jnp.isfinite(out), out
    assert jnp.allclose(out, ref, rtol=5e-4, atol=1e-6), (out, ref)


if __name__ == "__main__":
    key = jax.random.PRNGKey(0)
    k1, k2, k3, k4, k5, k6 = jax.random.split(key, 6)

    # 1) Small NCHW, lane-aligned (2048 elems): no padding, single block.
    pred = jax.random.normal(k1, (2, 4, 16, 16), dtype=jnp.float32)
    true = (jax.random.uniform(k2, (2, 4, 16, 16)) > 0.5).astype(jnp.float32)
    _check(pred, true)

    # 2) Ragged (1326 elems, not a multiple of 128): minimal lane pad + in-kernel
    #    tail-row masking.
    pred_r = jax.random.normal(k3, (2, 3, 13, 17), dtype=jnp.float32)
    true_r = (jax.random.uniform(k4, (2, 3, 13, 17)) > 0.5).astype(jnp.float32)
    _check(pred_r, true_r)

    # 3) Larger (1.2M elems, lane-aligned): exercises 4096-row tiles, chunked
    #    unrolled inner loop, splits=2, the partial last block and the clamped
    #    redundant grid point — all with zero wrapper-side copies.
    pred_l = jax.random.normal(k5, (3, 8, 224, 224), dtype=jnp.float32)
    true_l = (jax.random.uniform(k6, (3, 8, 224, 224)) > 0.5).astype(jnp.float32)
    _check(pred_l, true_l)

    print("KERNEL_OK")
</pallas_src>

<mosaic_0001>
module attributes {stable_mosaic.version = 11 : i64} {
  func.func @kernel(%arg0: i32, %arg1: i32, %arg2: memref<16x128xf32, #tpu.memory_space<vmem>>, %arg3: memref<16x128xf32, #tpu.memory_space<vmem>>, %arg4: memref<8x128xf32, #tpu.memory_space<vmem>>) attributes {dimension_semantics = [#tpu.dimension_semantics<parallel>, #tpu.dimension_semantics<arbitrary>], iteration_bounds = array<i64: 1, 1>, scalar_prefetch = 0 : i64, scratch_operands = 0 : i64, tpu.core_type = #tpu.core_type<tc>, window_params = [{transform_indices = @transform_0, window_bounds = array<i64: 16, 128>}, {transform_indices = @transform_1, window_bounds = array<i64: 16, 128>}, {transform_indices = @transform_2, window_bounds = array<i64: 8, 128>}]} {
    %c0_i32 = arith.constant 0 : i32
    %0 = arith.cmpi eq, %arg1, %c0_i32 : i32
    %1 = arith.extui %0 : i1 to i32
    %c0_i32_0 = arith.constant 0 : i32
    %2 = arith.cmpi ne, %1, %c0_i32_0 : i32
    scf.if %2 {
      %cst_16 = arith.constant 0.000000e+00 : f32
      %48 = vector.broadcast %cst_16 : f32 to vector<8x128xf32>
      %c0_17 = arith.constant 0 : index
      %c0_18 = arith.constant 0 : index
      %49 = vector.load %arg4[%c0_17, %c0_18] : memref<8x128xf32, #tpu.memory_space<vmem>>, vector<8x128xf32>
      tpu.vector_store %arg4[%c0_17, %c0_18], %48 {strides = array<i32>} : memref<8x128xf32, #tpu.memory_space<vmem>>, vector<8x128xf32>,
    } else {
    }
    %c0 = arith.constant 0 : index
    %c0_1 = arith.constant 0 : index
    %3 = vector.load %arg4[%c0, %c0_1] : memref<8x128xf32, #tpu.memory_space<vmem>>, vector<8x128xf32>
    %cst = arith.constant 0.000000e+00 : f32
    %4 = vector.broadcast %cst : f32 to vector<8x128xf32>
    %c0_i32_2 = arith.constant 0 : i32
    %c16_i32 = arith.constant 16 : i32
    %5 = arith.muli %c0_i32_2, %c16_i32 : i32
    %6 = tpu.assume_multiple %5, 16 : i32
    %7 = arith.index_cast %6 : i32 to index
    %c0_3 = arith.constant 0 : index
    %8 = vector.load %arg2[%7, %c0_3] : memref<16x128xf32, #tpu.memory_space<vmem>>, vector<16x128xf32>
    %9 = arith.index_cast %6 : i32 to index
    %c0_4 = arith.constant 0 : index
    %10 = vector.load %arg3[%9, %c0_4] : memref<16x128xf32, #tpu.memory_space<vmem>>, vector<16x128xf32>
    %11 = math.absf %8 : vector<16x128xf32>
    %cst_5 = arith.constant 0.000000e+00 : f32
    %12 = vector.broadcast %cst_5 : f32 to vector<16x128xf32>
    %13 = arith.subf %12, %11 : vector<16x128xf32>
    %14 = math.exp %13 : vector<16x128xf32>
    %cst_6 = arith.constant 0.000000e+00 : f32
    %15 = vector.broadcast %cst_6 : f32 to vector<16x128xf32>
    %16 = arith.maximumf %8, %15 : vector<16x128xf32>
    %17 = arith.mulf %8, %10 : vector<16x128xf32>
    %18 = arith.subf %16, %17 : vector<16x128xf32>
    %19 = math.log1p %14 : vector<16x128xf32>
    %20 = arith.addf %18, %19 : vector<16x128xf32>
    %cst_7 = arith.constant 1.000000e+00 : f32
    %21 = vector.broadcast %cst_7 : f32 to vector<16x128xf32>
    %22 = arith.addf %21, %14 : vector<16x128xf32>
    %23 = tpu.reciprocal %22 {approx = true} : vector<16x128xf32> -> vector<16x128xf32>
    %cst_8 = arith.constant 0.000000e+00 : f32
    %24 = vector.broadcast %cst_8 : f32 to vector<16x128xf32>
    %25 = arith.cmpf oge, %8, %24 : vector<16x128xf32>
    %26 = arith.mulf %14, %23 : vector<16x128xf32>
    %27 = arith.select %25, %23, %26 : vector<16x128xi1>, vector<16x128xf32>
    %28 = arith.addf %27, %10 : vector<16x128xf32>
    %cst_9 = arith.constant 2.000000e+00 : f32
    %29 = vector.broadcast %cst_9 : f32 to vector<16x128xf32>
    %30 = arith.mulf %29, %27 : vector<16x128xf32>
    %31 = arith.mulf %30, %10 : vector<16x128xf32>
    %32 = arith.subf %28, %31 : vector<16x128xf32>
    %cst_10 = arith.constant 0.000000e+00 : f32
    %33 = vector.broadcast %cst_10 : f32 to vector<16x128xf32>
    %34 = arith.maximumf %32, %33 : vector<16x128xf32>
    %cst_11 = arith.constant -5.000000e-01 : f32
    %35 = vector.broadcast %cst_11 : f32 to vector<16x128xf32>
    %36 = arith.mulf %10, %35 : vector<16x128xf32>
    %cst_12 = arith.constant 7.500000e-01 : f32
    %37 = vector.broadcast %cst_12 : f32 to vector<16x128xf32>
    %38 = arith.addf %37, %36 : vector<16x128xf32>
    %39 = math.sqrt %34 : vector<16x128xf32>
    %40 = arith.mulf %34, %39 : vector<16x128xf32>
    %41 = arith.mulf %38, %40 : vector<16x128xf32>
    %42 = arith.mulf %20, %41 : vector<16x128xf32>
    %43 = vector.shape_cast %42 : vector<16x128xf32> to vector<2x8x128xf32>
    %cst_13 = arith.constant dense<0.000000e+00> : vector<8x128xf32>
    %44 = vector.multi_reduction <add>, %43, %cst_13 [0] : vector<2x8x128xf32> to vector<8x128xf32>
    %45 = arith.addf %4, %44 : vector<8x128xf32>
    %c1_i32 = arith.constant 1 : i32
    %46 = arith.addf %3, %45 : vector<8x128xf32>
    %c0_14 = arith.constant 0 : index
    %c0_15 = arith.constant 0 : index
    %47 = vector.load %arg4[%c0_14, %c0_15] : memref<8x128xf32, #tpu.memory_space<vmem>>, vector<8x128xf32>
    tpu.vector_store %arg4[%c0_14, %c0_15], %46 {strides = array<i32>} : memref<8x128xf32, #tpu.memory_space<vmem>>, vector<8x128xf32>,
    return
  }
  func.func @transform_0(%arg0: i32, %arg1: i32) -> (i32, i32) {
    %c1_i32 = arith.constant 1 : i32
    %0 = arith.muli %arg0, %c1_i32 : i32
    %1 = arith.addi %0, %arg1 : i32
    %c0_i32 = arith.constant 0 : i32
    %c0_i32_0 = arith.constant 0 : i32
    return %1, %c0_i32 : i32, i32
  }
  func.func @transform_1(%arg0: i32, %arg1: i32) -> (i32, i32) {
    %c1_i32 = arith.constant 1 : i32
    %0 = arith.muli %arg0, %c1_i32 : i32
    %1 = arith.addi %0, %arg1 : i32
    %c0_i32 = arith.constant 0 : i32
    %c0_i32_0 = arith.constant 0 : i32
    return %1, %c0_i32 : i32, i32
  }
  func.func @transform_2(%arg0: i32, %arg1: i32) -> (i32, i32) {
    %c0_i32 = arith.constant 0 : i32
    %c0_i32_0 = arith.constant 0 : i32
    return %arg0, %c0_i32 : i32, i32
  }
}

</mosaic_0001>

<llo_original>
// kernel: tpu_custom_call.1
$region0: #{tpu_custom_call.1}
  #allocation0 [shape = 'u32[]', space=smem, size = 0x4, offset = 0x4, fixed_abs, tag = 'smem constant byte address 0x4 - core index']
  #allocation1 [shape = 'u32[144,128]{1,0:T(1,128)}', space=vmem, size = 0x12000, scoped, tag = 'internal scratch']
  %s0 = inlined_call_operand.hbm [shape: f32[16,128], index: 0, kind: input, shape index: {}]
  %s1 = inlined_call_operand.hbm [shape: f32[16,128], index: 1, kind: input, shape index: {}]
  %s2 = inlined_call_operand.hbm [shape: f32[8,128], index: 2, kind: output, shape index: {}]
  %s3 = sld [smem:[#allocation0]]
  $region30: #{tpu_custom_call.1} parent=0
    _
  %s5 = ssub.s32 1, %s3
  %s6 = scalar_select 0, %s5, %s3
  $region1: #{tpu_custom_call.1} parent=0
    #allocation2 [shape = 'u8[8192]{0}', space=vmem, size = 0x2000, scoped, tag = 'input window, operand 0, single buffered']
    #allocation3 [shape = 's32[1]{0}', space=sflag, size = 0x4, scoped, tag = 'scoped memory for tpu_custom_call.1']
    #allocation4 [shape = 's32[1]{0}', space=sflag, size = 0x4, scoped, tag = 'scoped memory for tpu_custom_call.1']
    #allocation5 [shape = 'u8[8192]{0}', space=vmem, size = 0x2000, scoped, tag = 'input window, operand 1, single buffered']
    #allocation6 [shape = 's32[1]{0}', space=sflag, size = 0x4, scoped, tag = 'scoped memory for tpu_custom_call.1']
    #allocation7 [shape = 'u8[4096]{0}', space=vmem, size = 0x1000, scoped, tag = 'output window, operand 0, single buffered']
    %7 = vsyncpa [#allocation3], 0
    %8 = vsyncpa [#allocation6], 0
    %9 = vsyncpa [#allocation4], 0
    // Predicated region
    $region2: #{tpu_custom_call.1} parent=1 // pred_check
      _
    $region3: #{tpu_custom_call.1} parent=1 // pred_check_branch
      %11 = sbr.rel (0) target = $region5
    $region4: #{tpu_custom_call.1} parent=1 // pred_region
      %s12 = sadd.s32 0, 0
      %s13 = smul.u32 2, %s12
      %s15 = ssub.s32 256, 256
      %16 = vsyncadd [#allocation3], %s15
      %s17 = smul.addr %s13, 128
      %s18 = scalar_lea.hbm %s0, %s17
      %s19 = sshll.u32 [#allocation2], 4
      %s20 = int_to_ptr.vmem [resolvable:$true] %s19
      %25 = dma.hbm_to_vmem [thread:$0]  %s18, 256, %s20, [#allocation3], 128, 128, 8
    $region5: #{tpu_custom_call.1} parent=1 // pred_fallthru
      _
    // Predicated region
    $region6: #{tpu_custom_call.1} parent=1 // pred_check
      _
    $region7: #{tpu_custom_call.1} parent=1 // pred_check_branch
      %27 = sbr.rel (0) target = $region9
    $region8: #{tpu_custom_call.1} parent=1 // pred_region
      %s28 = sadd.s32 0, 0
      %s29 = smul.u32 2, %s28
      %s31 = ssub.s32 256, 256
      %32 = vsyncadd [#allocation6], %s31
      %s33 = smul.addr %s29, 128
      %s34 = scalar_lea.hbm %s1, %s33
      %s35 = sshll.u32 [#allocation5], 4
      %s36 = int_to_ptr.vmem [resolvable:$true] %s35
      %41 = dma.hbm_to_vmem [thread:$0]  %s34, 256, %s36, [#allocation6], 128, 128, 8
    $region9: #{tpu_custom_call.1} parent=1 // pred_fallthru
      _
    // Predicated region
    $region10: #{tpu_custom_call.1} parent=1 // pred_check
      _
    $region11: #{tpu_custom_call.1} parent=1 // pred_check_branch
      %43 = sbr.rel (0) target = $region13
    $region12: #{tpu_custom_call.1} parent=1 // pred_region
      %44 = dma.done [#allocation3], 256
    $region13: #{tpu_custom_call.1} parent=1 // pred_fallthru
      _
    // Predicated region
    $region14: #{tpu_custom_call.1} parent=1 // pred_check
      _
    $region15: #{tpu_custom_call.1} parent=1 // pred_check_branch
      %46 = sbr.rel (0) target = $region17
    $region16: #{tpu_custom_call.1} parent=1 // pred_region
      %47 = dma.done [#allocation6], 256
    $region17: #{tpu_custom_call.1} parent=1 // pred_fallthru
      _
    %s48 = sadd.s32 0, 0
    %s49 = smul.u32 2, %s48
    %s50 = sadd.s32 0, 0
    %s51 = smul.u32 2, %s50
    %p52 = scmp.eq.s32.totalorder 0, 0
    // Predicated region
    $region18: #{tpu_custom_call.1} parent=1 // pred_check
      %p53 = pneg %p52
    $region19: #{tpu_custom_call.1} parent=1 // pred_check_branch
      %55 = sbr.rel (%p53) target = $region21
    $region20: #{tpu_custom_call.1} parent=1 // pred_region
      %56 = vst [vmem:[#allocation7] sm:$0xff] 0.0
    $region21: #{tpu_custom_call.1} parent=1 // pred_fallthru
      _
    %v57 = vld [vmem:[#allocation7] sm:$0xff]
    %v58 = vld [vmem:[#allocation2] sm:$0xff]
    %v59 = vld [vmem:[#allocation2 + $0x8] sm:$0xff]
    %v60 = vld [vmem:[#allocation5] sm:$0xff]
    %v61 = vld [vmem:[#allocation5 + $0x8] sm:$0xff]
    %v62 = vand.u32 2147483647, %v58
    %v63 = vand.u32 2147483647, %v59
    %v64 = vsub.f32 0.0, %v62
    %v65 = vsub.f32 0.0, %v63
    %v66 = vmul.f32 %v64, 1.442695
    %v67 = vpow.pop %v66
    %v68 = vmul.f32 %v65, 1.442695
    %v69 = vpow.pop %v68
    %v70 = vmax.f32 %v58, 0.0
    %v71 = vmax.f32 %v59, 0.0
    %v72 = vmul.f32 %v58, %v60
    %v73 = vmul.f32 %v59, %v61
    %v74 = vsub.f32 %v70, %v72
    %v75 = vsub.f32 %v71, %v73
    %v76 = vadd.f32 %v67, 1.0
    %v77 = vlog2.pop %v76
    %v78 = vmul.f32 %v77, 0.6931472
    %v79 = vmul.f32 -0.5, %v67
    %v80 = vadd.f32 %v79, 1.0
    %v81 = vmul.f32 %v80, %v67
    %v82 = vand.u32 2147483647, %v67
    %vm83 = vcmp.lt.f32.partialorder %v82, 0.0004427343
    %v84 = vsel %vm83, %v81, %v78
    %v85 = vadd.f32 %v69, 1.0
    %v86 = vlog2.pop %v85
    %v87 = vmul.f32 %v86, 0.6931472
    %v88 = vmul.f32 -0.5, %v69
    %v89 = vadd.f32 %v88, 1.0
    %v90 = vmul.f32 %v89, %v69
    %v91 = vand.u32 2147483647, %v69
    %vm92 = vcmp.lt.f32.partialorder %v91, 0.0004427343
    %v93 = vsel %vm92, %v90, %v87
    %v94 = vadd.f32 %v74, %v84
    %v95 = vadd.f32 %v75, %v93
    %v96 = vadd.f32 %v67, 1.0
    %v97 = vadd.f32 %v69, 1.0
    %v98 = vrcp.pop %v96
    %v99 = vrcp.pop %v97
    %vm100 = vcmp.ge.f32.partialorder %v58, 0.0
    %vm101 = vcmp.ge.f32.partialorder %v59, 0.0
    %v102 = vmul.f32 %v67, %v98
    %v103 = vmul.f32 %v69, %v99
    %v104 = vsel %vm100, %v98, %v102
    %v105 = vsel %vm101, %v99, %v103
    %v106 = vadd.f32 %v104, %v60
    %v107 = vadd.f32 %v105, %v61
    %v108 = vmul.f32 %v104, 2.0
    %v109 = vmul.f32 %v105, 2.0
    %v110 = vmul.f32 %v108, %v60
    %v111 = vmul.f32 %v109, %v61
    %v112 = vsub.f32 %v106, %v110
    %v113 = vsub.f32 %v107, %v111
    %v114 = vmax.f32 %v112, 0.0
    %v115 = vmax.f32 %v113, 0.0
    %v116 = vmul.f32 %v60, -0.5
    %v117 = vmul.f32 %v61, -0.5
    %v118 = vadd.f32 %v116, 0.75
    %v119 = vadd.f32 %v117, 0.75
    %v120 = vrsqrt.pop %v114
    %v121 = vmul.f32 %v114, %v120
    %vm122 = vcmp.eq.f32.partialorder %v114, inf
    %v123 = vsel %vm122, %v114, %v121
    %vm124 = vcmp.eq.f32.partialorder %v114, 0.0
    %v125 = vand.u32 %v114, 2147483648
    %v126 = vsel %vm124, %v125, %v123
    %v127 = vrsqrt.pop %v115
    %v128 = vmul.f32 %v115, %v127
    %vm129 = vcmp.eq.f32.partialorder %v115, inf
    %v130 = vsel %vm129, %v115, %v128
    %vm131 = vcmp.eq.f32.partialorder %v115, 0.0
    %v132 = vand.u32 %v115, 2147483648
    %v133 = vsel %vm131, %v132, %v130
    %v134 = vmul.f32 %v114, %v126
    %v135 = vmul.f32 %v115, %v133
    %v136 = vmul.f32 %v118, %v134
    %v137 = vmul.f32 %v119, %v135
    %v138 = vmul.f32 %v94, %v136
    %v139 = vmul.f32 %v95, %v137
    %v140 = vadd.f32 %v138, %v139
    %v141 = vadd.f32 %v140, 0.0
    %v142 = vadd.f32 %v57, %v141
    %143 = vst [vmem:[#allocation7] sm:$0xff] %v142
    // Predicated region
    $region22: #{tpu_custom_call.1} parent=1 // pred_check
      _
    $region23: #{tpu_custom_call.1} parent=1 // pred_check_branch
      %145 = sbr.rel (0) target = $region25
    $region24: #{tpu_custom_call.1} parent=1 // pred_region
      %s147 = ssub.s32 128, 128
      %148 = vsyncadd [#allocation4], %s147
      %s150 = sshll.u32 [#allocation7], 4
      %s151 = int_to_ptr.vmem [resolvable:$true] %s150
      %153 = dma.vmem_to_hbm [thread:$0]  %s151, 128, %s2, [#allocation4]
    $region25: #{tpu_custom_call.1} parent=1 // pred_fallthru
      _
    // Predicated region
    $region26: #{tpu_custom_call.1} parent=1 // pred_check
      _
    $region27: #{tpu_custom_call.1} parent=1 // pred_check_branch
      %155 = sbr.rel (0) target = $region29
    $region28: #{tpu_custom_call.1} parent=1 // pred_region
      %156 = dma.done [#allocation4], 128
    $region29: #{tpu_custom_call.1} parent=1 // pred_fallthru
      _
    %157 = vsyncpa [#allocation3], 1
    %158 = vsyncpa [#allocation6], 1
    %159 = vsyncpa [#allocation4], 1

</llo_original>
